<compile_context>
chip_gen: v6e
topology: v6e:2x2x1
jax: 0.10.0
libtpu: 0.0.40
codegen_flags: <defaults>
</compile_context>

<pallas_src>
import jax
import jax.numpy as jnp
from jax.experimental import pallas as pl
from jax.experimental.pallas import tpu as pltpu

_HIDDEN = 16
_LANES = 128
_STRIP = 32   # rows per in-kernel strip: (32, 128) f32 = 4 vregs


def _strip_fma(w1_ref, b1_ref, w2_ref, b2_ref, x_ref, o_ref, r, size):
    """out[r:r+size] = b2 + sum_j w2[j] * tanh(w1[j] * x[r:r+size] + b1[j])."""
    x = x_ref[pl.ds(r, size), :]
    # Statically unrolled 16-unit tanh/FMA chain; the VPU mul/add work
    # co-issues as filler under the EUP tanh pushes.
    acc = jnp.tanh(x * w1_ref[0] + b1_ref[0]) * w2_ref[0] + b2_ref[0]
    for j in range(1, _HIDDEN):
        acc = acc + jnp.tanh(x * w1_ref[j] + b1_ref[j]) * w2_ref[j]
    o_ref[pl.ds(r, size), :] = acc.astype(o_ref.dtype)


def _mlp_kernel(w1_ref, b1_ref, w2_ref, b2_ref, x_ref, o_ref):
    # x_ref / o_ref: (block_rows, 128) lane-dense tiles in VMEM.
    block_rows = x_ref.shape[0]
    n_full = block_rows // _STRIP
    tail = block_rows % _STRIP

    if n_full > 0:
        @pl.loop(0, n_full)
        def _(s):
            r = pl.multiple_of(s * _STRIP, _STRIP)
            _strip_fma(w1_ref, b1_ref, w2_ref, b2_ref, x_ref, o_ref, r, _STRIP)

    if tail > 0:  # static remainder strip (block_rows not a multiple of 32)
        _strip_fma(w1_ref, b1_ref, w2_ref, b2_ref, x_ref, o_ref,
                   n_full * _STRIP, tail)


def mlp_forward(x, w1, b1, w2, b2, *, tile_rows=2048):
    """Forward pass of Linear(1,16) -> Tanh -> Linear(16,1).

    x : (N, 1) float32 (same layout as the PyTorch module input)
    w1: (16,)  first-layer weights   (torch weight[:, 0])
    b1: (16,)  first-layer bias
    w2: (16,)  second-layer weights  (torch weight[0, :])
    b2: (1,)   second-layer bias
    """
    assert tile_rows > 0 and tile_rows % _STRIP == 0, \
        "tile_rows must be a positive multiple of the strip size (32)"

    n = x.shape[0]
    x = x.astype(jnp.float32)

    rows = -(-n // _LANES)          # ceil(N / 128)
    n_slab = rows * _LANES

    # Pack N onto the lane axis. Copy-free when N % 128 == 0; otherwise pad
    # only the tail up to the next multiple of 128.
    x_flat = x.reshape(-1)
    if n_slab != n:
        x_flat = jnp.pad(x_flat, (0, n_slab - n))
    x2d = x_flat.reshape(rows, _LANES)

    # Block shape: full row extent when it fits (always legal), otherwise a
    # multiple-of-8 tile; ragged last blocks are handled by Pallas.
    block_rows = rows if rows <= tile_rows else tile_rows
    grid = (-(-rows // block_rows),)

    smem = pl.BlockSpec(memory_space=pltpu.SMEM)

    out2d = pl.pallas_call(
        _mlp_kernel,
        out_shape=jax.ShapeDtypeStruct((rows, _LANES), jnp.float32),
        grid=grid,
        in_specs=[
            smem, smem, smem, smem,                                 # params in SMEM
            pl.BlockSpec((block_rows, _LANES), lambda i: (i, 0)),   # x row-tile
        ],
        out_specs=pl.BlockSpec((block_rows, _LANES), lambda i: (i, 0)),
        compiler_params=pltpu.CompilerParams(
            dimension_semantics=("parallel",),   # shardable across TCs
        ),
    )(w1, b1, w2, b2, x2d)

    # Back to the module's (N, 1) output; copy-free when N % 128 == 0.
    out_flat = out2d.reshape(-1)
    if n_slab != n:
        out_flat = out_flat[:n]
    return out_flat.reshape(n, 1)


def init_params(key):
    """Torch nn.Linear default init: U[-1/sqrt(fan_in), 1/sqrt(fan_in)]."""
    k1, k2, k3, k4 = jax.random.split(key, 4)
    bound1 = 1.0                                  # Linear(1, 16): fan_in = 1
    w1 = jax.random.uniform(k1, (_HIDDEN,), jnp.float32, -bound1, bound1)
    b1 = jax.random.uniform(k2, (_HIDDEN,), jnp.float32, -bound1, bound1)
    bound2 = 1.0 / jnp.sqrt(float(_HIDDEN))       # Linear(16, 1): fan_in = 16
    w2 = jax.random.uniform(k3, (_HIDDEN,), jnp.float32, -bound2, bound2)
    b2 = jax.random.uniform(k4, (1,), jnp.float32, -bound2, bound2)
    return w1, b1, w2, b2


if __name__ == "__main__":
    key = jax.random.PRNGKey(0)
    k_x, k_p = jax.random.split(key)
    w1, b1, w2, b2 = init_params(k_p)

    def ref_forward(x):
        h = jnp.tanh(x @ w1.reshape(1, _HIDDEN) + b1)
        return h @ w2.reshape(_HIDDEN, 1) + b2

    ok = True
    # Exercise: tiny tail-only strip, non-multiple-of-128 pad path,
    # multiple-of-128 copy-free path (pl.loop + remainder strip), and a
    # multi-step grid with a partial final HBM block.
    cases = (
        (8, {}),
        (1000, {}),
        (4224, {}),
        (20000, dict(tile_rows=64)),
    )
    for n, kw in cases:
        x = jax.random.normal(jax.random.fold_in(k_x, n), (n, 1), jnp.float32)
        out = jax.block_until_ready(mlp_forward(x, w1, b1, w2, b2, **kw))
        ref = ref_forward(x)
        ok = ok and (out.shape == (n, 1))
        ok = ok and bool(jnp.allclose(out, ref, atol=1e-5, rtol=1e-5))
    assert ok
    print("KERNEL_OK")
</pallas_src>

<mosaic_0001>
module attributes {stable_mosaic.version = 11 : i64} {
  func.func @_mlp_kernel(%arg0: i32, %arg1: memref<16xf32, #tpu.memory_space<smem>>, %arg2: memref<16xf32, #tpu.memory_space<smem>>, %arg3: memref<16xf32, #tpu.memory_space<smem>>, %arg4: memref<1xf32, #tpu.memory_space<smem>>, %arg5: memref<1x128xf32, #tpu.memory_space<vmem>>, %arg6: memref<1x128xf32, #tpu.memory_space<vmem>>) attributes {dimension_semantics = [#tpu.dimension_semantics<parallel>], iteration_bounds = array<i64: 1>, scalar_prefetch = 0 : i64, scratch_operands = 0 : i64, tpu.core_type = #tpu.core_type<tc>, window_params = [{transform_indices = @transform_0, window_bounds = array<i64: 16>}, {transform_indices = @transform_1, window_bounds = array<i64: 16>}, {transform_indices = @transform_2, window_bounds = array<i64: 16>}, {transform_indices = @transform_3, window_bounds = array<i64: 1>}, {transform_indices = @transform_4, window_bounds = array<i64: 1, 128>}, {transform_indices = @transform_5, window_bounds = array<i64: 1, 128>}]} {
    %c0 = arith.constant 0 : index
    %c0_0 = arith.constant 0 : index
    %0 = vector.load %arg5[%c0, %c0_0] : memref<1x128xf32, #tpu.memory_space<vmem>>, vector<1x128xf32>
    %c0_1 = arith.constant 0 : index
    %1 = memref.load %arg1[%c0_1] : memref<16xf32, #tpu.memory_space<smem>>
    %2 = vector.broadcast %1 : f32 to vector<1x128xf32>
    %3 = arith.mulf %0, %2 : vector<1x128xf32>
    %c0_2 = arith.constant 0 : index
    %4 = memref.load %arg2[%c0_2] : memref<16xf32, #tpu.memory_space<smem>>
    %5 = vector.broadcast %4 : f32 to vector<1x128xf32>
    %6 = arith.addf %3, %5 : vector<1x128xf32>
    %7 = math.tanh %6 : vector<1x128xf32>
    %c0_3 = arith.constant 0 : index
    %8 = memref.load %arg3[%c0_3] : memref<16xf32, #tpu.memory_space<smem>>
    %9 = vector.broadcast %8 : f32 to vector<1x128xf32>
    %10 = arith.mulf %7, %9 : vector<1x128xf32>
    %c0_4 = arith.constant 0 : index
    %11 = memref.load %arg4[%c0_4] : memref<1xf32, #tpu.memory_space<smem>>
    %12 = vector.broadcast %11 : f32 to vector<1x128xf32>
    %13 = arith.addf %10, %12 : vector<1x128xf32>
    %c1 = arith.constant 1 : index
    %14 = memref.load %arg1[%c1] : memref<16xf32, #tpu.memory_space<smem>>
    %15 = vector.broadcast %14 : f32 to vector<1x128xf32>
    %16 = arith.mulf %0, %15 : vector<1x128xf32>
    %c1_5 = arith.constant 1 : index
    %17 = memref.load %arg2[%c1_5] : memref<16xf32, #tpu.memory_space<smem>>
    %18 = vector.broadcast %17 : f32 to vector<1x128xf32>
    %19 = arith.addf %16, %18 : vector<1x128xf32>
    %20 = math.tanh %19 : vector<1x128xf32>
    %c1_6 = arith.constant 1 : index
    %21 = memref.load %arg3[%c1_6] : memref<16xf32, #tpu.memory_space<smem>>
    %22 = vector.broadcast %21 : f32 to vector<1x128xf32>
    %23 = arith.mulf %20, %22 : vector<1x128xf32>
    %24 = arith.addf %13, %23 : vector<1x128xf32>
    %c2 = arith.constant 2 : index
    %25 = memref.load %arg1[%c2] : memref<16xf32, #tpu.memory_space<smem>>
    %26 = vector.broadcast %25 : f32 to vector<1x128xf32>
    %27 = arith.mulf %0, %26 : vector<1x128xf32>
    %c2_7 = arith.constant 2 : index
    %28 = memref.load %arg2[%c2_7] : memref<16xf32, #tpu.memory_space<smem>>
    %29 = vector.broadcast %28 : f32 to vector<1x128xf32>
    %30 = arith.addf %27, %29 : vector<1x128xf32>
    %31 = math.tanh %30 : vector<1x128xf32>
    %c2_8 = arith.constant 2 : index
    %32 = memref.load %arg3[%c2_8] : memref<16xf32, #tpu.memory_space<smem>>
    %33 = vector.broadcast %32 : f32 to vector<1x128xf32>
    %34 = arith.mulf %31, %33 : vector<1x128xf32>
    %35 = arith.addf %24, %34 : vector<1x128xf32>
    %c3 = arith.constant 3 : index
    %36 = memref.load %arg1[%c3] : memref<16xf32, #tpu.memory_space<smem>>
    %37 = vector.broadcast %36 : f32 to vector<1x128xf32>
    %38 = arith.mulf %0, %37 : vector<1x128xf32>
    %c3_9 = arith.constant 3 : index
    %39 = memref.load %arg2[%c3_9] : memref<16xf32, #tpu.memory_space<smem>>
    %40 = vector.broadcast %39 : f32 to vector<1x128xf32>
    %41 = arith.addf %38, %40 : vector<1x128xf32>
    %42 = math.tanh %41 : vector<1x128xf32>
    %c3_10 = arith.constant 3 : index
    %43 = memref.load %arg3[%c3_10] : memref<16xf32, #tpu.memory_space<smem>>
    %44 = vector.broadcast %43 : f32 to vector<1x128xf32>
    %45 = arith.mulf %42, %44 : vector<1x128xf32>
    %46 = arith.addf %35, %45 : vector<1x128xf32>
    %c4 = arith.constant 4 : index
    %47 = memref.load %arg1[%c4] : memref<16xf32, #tpu.memory_space<smem>>
    %48 = vector.broadcast %47 : f32 to vector<1x128xf32>
    %49 = arith.mulf %0, %48 : vector<1x128xf32>
    %c4_11 = arith.constant 4 : index
    %50 = memref.load %arg2[%c4_11] : memref<16xf32, #tpu.memory_space<smem>>
    %51 = vector.broadcast %50 : f32 to vector<1x128xf32>
    %52 = arith.addf %49, %51 : vector<1x128xf32>
    %53 = math.tanh %52 : vector<1x128xf32>
    %c4_12 = arith.constant 4 : index
    %54 = memref.load %arg3[%c4_12] : memref<16xf32, #tpu.memory_space<smem>>
    %55 = vector.broadcast %54 : f32 to vector<1x128xf32>
    %56 = arith.mulf %53, %55 : vector<1x128xf32>
    %57 = arith.addf %46, %56 : vector<1x128xf32>
    %c5 = arith.constant 5 : index
    %58 = memref.load %arg1[%c5] : memref<16xf32, #tpu.memory_space<smem>>
    %59 = vector.broadcast %58 : f32 to vector<1x128xf32>
    %60 = arith.mulf %0, %59 : vector<1x128xf32>
    %c5_13 = arith.constant 5 : index
    %61 = memref.load %arg2[%c5_13] : memref<16xf32, #tpu.memory_space<smem>>
    %62 = vector.broadcast %61 : f32 to vector<1x128xf32>
    %63 = arith.addf %60, %62 : vector<1x128xf32>
    %64 = math.tanh %63 : vector<1x128xf32>
    %c5_14 = arith.constant 5 : index
    %65 = memref.load %arg3[%c5_14] : memref<16xf32, #tpu.memory_space<smem>>
    %66 = vector.broadcast %65 : f32 to vector<1x128xf32>
    %67 = arith.mulf %64, %66 : vector<1x128xf32>
    %68 = arith.addf %57, %67 : vector<1x128xf32>
    %c6 = arith.constant 6 : index
    %69 = memref.load %arg1[%c6] : memref<16xf32, #tpu.memory_space<smem>>
    %70 = vector.broadcast %69 : f32 to vector<1x128xf32>
    %71 = arith.mulf %0, %70 : vector<1x128xf32>
    %c6_15 = arith.constant 6 : index
    %72 = memref.load %arg2[%c6_15] : memref<16xf32, #tpu.memory_space<smem>>
    %73 = vector.broadcast %72 : f32 to vector<1x128xf32>
    %74 = arith.addf %71, %73 : vector<1x128xf32>
    %75 = math.tanh %74 : vector<1x128xf32>
    %c6_16 = arith.constant 6 : index
    %76 = memref.load %arg3[%c6_16] : memref<16xf32, #tpu.memory_space<smem>>
    %77 = vector.broadcast %76 : f32 to vector<1x128xf32>
    %78 = arith.mulf %75, %77 : vector<1x128xf32>
    %79 = arith.addf %68, %78 : vector<1x128xf32>
    %c7 = arith.constant 7 : index
    %80 = memref.load %arg1[%c7] : memref<16xf32, #tpu.memory_space<smem>>
    %81 = vector.broadcast %80 : f32 to vector<1x128xf32>
    %82 = arith.mulf %0, %81 : vector<1x128xf32>
    %c7_17 = arith.constant 7 : index
    %83 = memref.load %arg2[%c7_17] : memref<16xf32, #tpu.memory_space<smem>>
    %84 = vector.broadcast %83 : f32 to vector<1x128xf32>
    %85 = arith.addf %82, %84 : vector<1x128xf32>
    %86 = math.tanh %85 : vector<1x128xf32>
    %c7_18 = arith.constant 7 : index
    %87 = memref.load %arg3[%c7_18] : memref<16xf32, #tpu.memory_space<smem>>
    %88 = vector.broadcast %87 : f32 to vector<1x128xf32>
    %89 = arith.mulf %86, %88 : vector<1x128xf32>
    %90 = arith.addf %79, %89 : vector<1x128xf32>
    %c8 = arith.constant 8 : index
    %91 = memref.load %arg1[%c8] : memref<16xf32, #tpu.memory_space<smem>>
    %92 = vector.broadcast %91 : f32 to vector<1x128xf32>
    %93 = arith.mulf %0, %92 : vector<1x128xf32>
    %c8_19 = arith.constant 8 : index
    %94 = memref.load %arg2[%c8_19] : memref<16xf32, #tpu.memory_space<smem>>
    %95 = vector.broadcast %94 : f32 to vector<1x128xf32>
    %96 = arith.addf %93, %95 : vector<1x128xf32>
    %97 = math.tanh %96 : vector<1x128xf32>
    %c8_20 = arith.constant 8 : index
    %98 = memref.load %arg3[%c8_20] : memref<16xf32, #tpu.memory_space<smem>>
    %99 = vector.broadcast %98 : f32 to vector<1x128xf32>
    %100 = arith.mulf %97, %99 : vector<1x128xf32>
    %101 = arith.addf %90, %100 : vector<1x128xf32>
    %c9 = arith.constant 9 : index
    %102 = memref.load %arg1[%c9] : memref<16xf32, #tpu.memory_space<smem>>
    %103 = vector.broadcast %102 : f32 to vector<1x128xf32>
    %104 = arith.mulf %0, %103 : vector<1x128xf32>
    %c9_21 = arith.constant 9 : index
    %105 = memref.load %arg2[%c9_21] : memref<16xf32, #tpu.memory_space<smem>>
    %106 = vector.broadcast %105 : f32 to vector<1x128xf32>
    %107 = arith.addf %104, %106 : vector<1x128xf32>
    %108 = math.tanh %107 : vector<1x128xf32>
    %c9_22 = arith.constant 9 : index
    %109 = memref.load %arg3[%c9_22] : memref<16xf32, #tpu.memory_space<smem>>
    %110 = vector.broadcast %109 : f32 to vector<1x128xf32>
    %111 = arith.mulf %108, %110 : vector<1x128xf32>
    %112 = arith.addf %101, %111 : vector<1x128xf32>
    %c10 = arith.constant 10 : index
    %113 = memref.load %arg1[%c10] : memref<16xf32, #tpu.memory_space<smem>>
    %114 = vector.broadcast %113 : f32 to vector<1x128xf32>
    %115 = arith.mulf %0, %114 : vector<1x128xf32>
    %c10_23 = arith.constant 10 : index
    %116 = memref.load %arg2[%c10_23] : memref<16xf32, #tpu.memory_space<smem>>
    %117 = vector.broadcast %116 : f32 to vector<1x128xf32>
    %118 = arith.addf %115, %117 : vector<1x128xf32>
    %119 = math.tanh %118 : vector<1x128xf32>
    %c10_24 = arith.constant 10 : index
    %120 = memref.load %arg3[%c10_24] : memref<16xf32, #tpu.memory_space<smem>>
    %121 = vector.broadcast %120 : f32 to vector<1x128xf32>
    %122 = arith.mulf %119, %121 : vector<1x128xf32>
    %123 = arith.addf %112, %122 : vector<1x128xf32>
    %c11 = arith.constant 11 : index
    %124 = memref.load %arg1[%c11] : memref<16xf32, #tpu.memory_space<smem>>
    %125 = vector.broadcast %124 : f32 to vector<1x128xf32>
    %126 = arith.mulf %0, %125 : vector<1x128xf32>
    %c11_25 = arith.constant 11 : index
    %127 = memref.load %arg2[%c11_25] : memref<16xf32, #tpu.memory_space<smem>>
    %128 = vector.broadcast %127 : f32 to vector<1x128xf32>
    %129 = arith.addf %126, %128 : vector<1x128xf32>
    %130 = math.tanh %129 : vector<1x128xf32>
    %c11_26 = arith.constant 11 : index
    %131 = memref.load %arg3[%c11_26] : memref<16xf32, #tpu.memory_space<smem>>
    %132 = vector.broadcast %131 : f32 to vector<1x128xf32>
    %133 = arith.mulf %130, %132 : vector<1x128xf32>
    %134 = arith.addf %123, %133 : vector<1x128xf32>
    %c12 = arith.constant 12 : index
    %135 = memref.load %arg1[%c12] : memref<16xf32, #tpu.memory_space<smem>>
    %136 = vector.broadcast %135 : f32 to vector<1x128xf32>
    %137 = arith.mulf %0, %136 : vector<1x128xf32>
    %c12_27 = arith.constant 12 : index
    %138 = memref.load %arg2[%c12_27] : memref<16xf32, #tpu.memory_space<smem>>
    %139 = vector.broadcast %138 : f32 to vector<1x128xf32>
    %140 = arith.addf %137, %139 : vector<1x128xf32>
    %141 = math.tanh %140 : vector<1x128xf32>
    %c12_28 = arith.constant 12 : index
    %142 = memref.load %arg3[%c12_28] : memref<16xf32, #tpu.memory_space<smem>>
    %143 = vector.broadcast %142 : f32 to vector<1x128xf32>
    %144 = arith.mulf %141, %143 : vector<1x128xf32>
    %145 = arith.addf %134, %144 : vector<1x128xf32>
    %c13 = arith.constant 13 : index
    %146 = memref.load %arg1[%c13] : memref<16xf32, #tpu.memory_space<smem>>
    %147 = vector.broadcast %146 : f32 to vector<1x128xf32>
    %148 = arith.mulf %0, %147 : vector<1x128xf32>
    %c13_29 = arith.constant 13 : index
    %149 = memref.load %arg2[%c13_29] : memref<16xf32, #tpu.memory_space<smem>>
    %150 = vector.broadcast %149 : f32 to vector<1x128xf32>
    %151 = arith.addf %148, %150 : vector<1x128xf32>
    %152 = math.tanh %151 : vector<1x128xf32>
    %c13_30 = arith.constant 13 : index
    %153 = memref.load %arg3[%c13_30] : memref<16xf32, #tpu.memory_space<smem>>
    %154 = vector.broadcast %153 : f32 to vector<1x128xf32>
    %155 = arith.mulf %152, %154 : vector<1x128xf32>
    %156 = arith.addf %145, %155 : vector<1x128xf32>
    %c14 = arith.constant 14 : index
    %157 = memref.load %arg1[%c14] : memref<16xf32, #tpu.memory_space<smem>>
    %158 = vector.broadcast %157 : f32 to vector<1x128xf32>
    %159 = arith.mulf %0, %158 : vector<1x128xf32>
    %c14_31 = arith.constant 14 : index
    %160 = memref.load %arg2[%c14_31] : memref<16xf32, #tpu.memory_space<smem>>
    %161 = vector.broadcast %160 : f32 to vector<1x128xf32>
    %162 = arith.addf %159, %161 : vector<1x128xf32>
    %163 = math.tanh %162 : vector<1x128xf32>
    %c14_32 = arith.constant 14 : index
    %164 = memref.load %arg3[%c14_32] : memref<16xf32, #tpu.memory_space<smem>>
    %165 = vector.broadcast %164 : f32 to vector<1x128xf32>
    %166 = arith.mulf %163, %165 : vector<1x128xf32>
    %167 = arith.addf %156, %166 : vector<1x128xf32>
    %c15 = arith.constant 15 : index
    %168 = memref.load %arg1[%c15] : memref<16xf32, #tpu.memory_space<smem>>
    %169 = vector.broadcast %168 : f32 to vector<1x128xf32>
    %170 = arith.mulf %0, %169 : vector<1x128xf32>
    %c15_33 = arith.constant 15 : index
    %171 = memref.load %arg2[%c15_33] : memref<16xf32, #tpu.memory_space<smem>>
    %172 = vector.broadcast %171 : f32 to vector<1x128xf32>
    %173 = arith.addf %170, %172 : vector<1x128xf32>
    %174 = math.tanh %173 : vector<1x128xf32>
    %c15_34 = arith.constant 15 : index
    %175 = memref.load %arg3[%c15_34] : memref<16xf32, #tpu.memory_space<smem>>
    %176 = vector.broadcast %175 : f32 to vector<1x128xf32>
    %177 = arith.mulf %174, %176 : vector<1x128xf32>
    %178 = arith.addf %167, %177 : vector<1x128xf32>
    %c0_35 = arith.constant 0 : index
    %c0_36 = arith.constant 0 : index
    %179 = vector.load %arg6[%c0_35, %c0_36] : memref<1x128xf32, #tpu.memory_space<vmem>>, vector<1x128xf32>
    tpu.vector_store %arg6[%c0_35, %c0_36], %178 {strides = array<i32>} : memref<1x128xf32, #tpu.memory_space<vmem>>, vector<1x128xf32>,
    return
  }
  func.func @transform_0(%arg0: i32) -> i32 {
    %c0_i32 = arith.constant 0 : i32
    %c0_i32_0 = arith.constant 0 : i32
    return %c0_i32 : i32
  }
  func.func @transform_1(%arg0: i32) -> i32 {
    %c0_i32 = arith.constant 0 : i32
    %c0_i32_0 = arith.constant 0 : i32
    return %c0_i32 : i32
  }
  func.func @transform_2(%arg0: i32) -> i32 {
    %c0_i32 = arith.constant 0 : i32
    %c0_i32_0 = arith.constant 0 : i32
    return %c0_i32 : i32
  }
  func.func @transform_3(%arg0: i32) -> i32 {
    %c0_i32 = arith.constant 0 : i32
    %c0_i32_0 = arith.constant 0 : i32
    return %c0_i32 : i32
  }
  func.func @transform_4(%arg0: i32) -> (i32, i32) {
    %c0_i32 = arith.constant 0 : i32
    %c0_i32_0 = arith.constant 0 : i32
    return %arg0, %c0_i32 : i32, i32
  }
  func.func @transform_5(%arg0: i32) -> (i32, i32) {
    %c0_i32 = arith.constant 0 : i32
    %c0_i32_0 = arith.constant 0 : i32
    return %arg0, %c0_i32 : i32, i32
  }
}

</mosaic_0001>

<llo_original>
// kernel: tpu_custom_call.1
$region0: #{tpu_custom_call.1}
  #allocation0 [shape = 'u32[]', space=smem, size = 0x4, offset = 0x4, fixed_abs, tag = 'smem constant byte address 0x4 - core index']
  #allocation1 [shape = 'u32[144,128]{1,0:T(1,128)}', space=vmem, size = 0x12000, scoped, tag = 'internal scratch']
  #allocation2 [shape = 'f32[1]{0:T(128)S(6)}', space=smem, size = 0x200, scoped, tag = 'scoped memory for tpu_custom_call.1']
  %s0 = inlined_call_operand.vmem [shape: f32[16], index: 0, kind: input, shape index: {}]
  %s1 = inlined_call_operand.vmem [shape: f32[16], index: 1, kind: input, shape index: {}]
  %s2 = inlined_call_operand.vmem [shape: f32[16], index: 2, kind: input, shape index: {}]
  %s3 = inlined_call_operand.<no memory space> [shape: f32[1], index: 3, kind: input, shape index: {}]
  %s4 = inlined_call_operand.vmem [shape: f32[1,128], index: 4, kind: input, shape index: {}]
  %s5 = inlined_call_operand.hbm [shape: f32[1,128], index: 5, kind: output, shape index: {}]
  %s6 = sld [smem:[#allocation0]]
  $region42: #{tpu_custom_call.1} parent=0
    _
  %s8 = ssub.s32 1, %s6
  %s9 = scalar_select 0, %s8, %s6
  %10 = sst [smem:[#allocation2]] %s3
  $region1: #{tpu_custom_call.1} parent=0
    #allocation3 [shape = 'u8[512]{0}', space=smem, size = 0x200, scoped, tag = 'input window, operand 0, single buffered']
    #allocation4 [shape = 's32[1]{0}', space=sflag, size = 0x4, scoped, tag = 'scoped memory for tpu_custom_call.1']
    #allocation5 [shape = 's32[1]{0}', space=sflag, size = 0x4, scoped, tag = 'scoped memory for tpu_custom_call.1']
    #allocation6 [shape = 'u8[512]{0}', space=smem, size = 0x200, scoped, tag = 'input window, operand 1, single buffered']
    #allocation7 [shape = 's32[1]{0}', space=sflag, size = 0x4, scoped, tag = 'scoped memory for tpu_custom_call.1']
    #allocation8 [shape = 'u8[512]{0}', space=smem, size = 0x200, scoped, tag = 'input window, operand 2, single buffered']
    #allocation9 [shape = 'u8[512]{0}', space=vmem, size = 0x400, scoped, tag = 'output window, operand 0, single buffered']
    %11 = vsyncpa [#allocation5], 0
    %12 = vsyncpa [#allocation7], 0
    %13 = vsyncpa [#allocation4], 0
    // Predicated region
    $region2: #{tpu_custom_call.1} parent=1 // pred_check
      _
    $region3: #{tpu_custom_call.1} parent=1 // pred_check_branch
      %15 = sbr.rel (0) target = $region5
    $region4: #{tpu_custom_call.1} parent=1 // pred_region
      %s17 = ssub.s32 16, 16
      %18 = vsyncadd [#allocation5], %s17
      %s20 = sshll.u32 %s0, 4
      %s21 = int_to_ptr.vmem [resolvable:$true] %s20
      %23 = dma.vmem_to_smem %s21, 16, [#allocation3], [#allocation5]
    $region5: #{tpu_custom_call.1} parent=1 // pred_fallthru
      _
    // Predicated region
    $region6: #{tpu_custom_call.1} parent=1 // pred_check
      _
    $region7: #{tpu_custom_call.1} parent=1 // pred_check_branch
      %25 = sbr.rel (0) target = $region9
    $region8: #{tpu_custom_call.1} parent=1 // pred_region
      %s27 = ssub.s32 16, 16
      %28 = vsyncadd [#allocation7], %s27
      %s30 = sshll.u32 %s1, 4
      %s31 = int_to_ptr.vmem [resolvable:$true] %s30
      %33 = dma.vmem_to_smem %s31, 16, [#allocation6], [#allocation7]
    $region9: #{tpu_custom_call.1} parent=1 // pred_fallthru
      _
    // Predicated region
    $region10: #{tpu_custom_call.1} parent=1 // pred_check
      _
    $region11: #{tpu_custom_call.1} parent=1 // pred_check_branch
      %35 = sbr.rel (0) target = $region13
    $region12: #{tpu_custom_call.1} parent=1 // pred_region
      %s37 = ssub.s32 16, 16
      %38 = vsyncadd [#allocation7], %s37
      %s40 = sshll.u32 %s2, 4
      %s41 = int_to_ptr.vmem [resolvable:$true] %s40
      %43 = dma.vmem_to_smem %s41, 16, [#allocation8], [#allocation7]
    $region13: #{tpu_custom_call.1} parent=1 // pred_fallthru
      _
    // Predicated region
    $region14: #{tpu_custom_call.1} parent=1 // pred_check
      _
    $region15: #{tpu_custom_call.1} parent=1 // pred_check_branch
      %45 = sbr.rel (0) target = $region17
    $region16: #{tpu_custom_call.1} parent=1 // pred_region
      _
    $region17: #{tpu_custom_call.1} parent=1 // pred_fallthru
      _
    // Predicated region
    $region18: #{tpu_custom_call.1} parent=1 // pred_check
      _
    $region19: #{tpu_custom_call.1} parent=1 // pred_check_branch
      %47 = sbr.rel (0) target = $region21
    $region20: #{tpu_custom_call.1} parent=1 // pred_region
      _
    $region21: #{tpu_custom_call.1} parent=1 // pred_fallthru
      _
    // Predicated region
    $region22: #{tpu_custom_call.1} parent=1 // pred_check
      _
    $region23: #{tpu_custom_call.1} parent=1 // pred_check_branch
      %49 = sbr.rel (0) target = $region25
    $region24: #{tpu_custom_call.1} parent=1 // pred_region
      %50 = dma.done [#allocation5], 16
    $region25: #{tpu_custom_call.1} parent=1 // pred_fallthru
      _
    // Predicated region
    $region26: #{tpu_custom_call.1} parent=1 // pred_check
      _
    $region27: #{tpu_custom_call.1} parent=1 // pred_check_branch
      %52 = sbr.rel (0) target = $region29
    $region28: #{tpu_custom_call.1} parent=1 // pred_region
      %53 = dma.done [#allocation7], 16
    $region29: #{tpu_custom_call.1} parent=1 // pred_fallthru
      _
    // Predicated region
    $region30: #{tpu_custom_call.1} parent=1 // pred_check
      _
    $region31: #{tpu_custom_call.1} parent=1 // pred_check_branch
      %55 = sbr.rel (0) target = $region33
    $region32: #{tpu_custom_call.1} parent=1 // pred_region
      %56 = dma.done [#allocation7], 16
    $region33: #{tpu_custom_call.1} parent=1 // pred_fallthru
      _
    %57 = sfence
    %v58 = vld [vmem:[%s4] sm:$0x1]
    %s59 = sld [smem:[#allocation3]]
    %v60 = vstv %s59
    %v61 = vmul.f32 %v58, %v60
    %s62 = sld [smem:[#allocation6]]
    %v63 = vstv %s62
    %v64 = vadd.f32 %v61, %v63
    %v65 = vtanh.pop %v64
    %s66 = sld [smem:[#allocation8]]
    %v67 = vstv %s66
    %v68 = vmul.f32 %v65, %v67
    %s69 = sld [smem:[#allocation2]]
    %v70 = vstv %s69
    %v71 = vadd.f32 %v68, %v70
    %s72 = sld [smem:[#allocation3 + $0x1]]
    %v73 = vstv %s72
    %v74 = vmul.f32 %v58, %v73
    %s75 = sld [smem:[#allocation6 + $0x1]]
    %v76 = vstv %s75
    %v77 = vadd.f32 %v74, %v76
    %v78 = vtanh.pop %v77
    %s79 = sld [smem:[#allocation8 + $0x1]]
    %v80 = vstv %s79
    %v81 = vmul.f32 %v78, %v80
    %v82 = vadd.f32 %v71, %v81
    %s83 = sld [smem:[#allocation3 + $0x2]]
    %v84 = vstv %s83
    %v85 = vmul.f32 %v58, %v84
    %s86 = sld [smem:[#allocation6 + $0x2]]
    %v87 = vstv %s86
    %v88 = vadd.f32 %v85, %v87
    %v89 = vtanh.pop %v88
    %s90 = sld [smem:[#allocation8 + $0x2]]
    %v91 = vstv %s90
    %v92 = vmul.f32 %v89, %v91
    %v93 = vadd.f32 %v82, %v92
    %s94 = sld [smem:[#allocation3 + $0x3]]
    %v95 = vstv %s94
    %v96 = vmul.f32 %v58, %v95
    %s97 = sld [smem:[#allocation6 + $0x3]]
    %v98 = vstv %s97
    %v99 = vadd.f32 %v96, %v98
    %v100 = vtanh.pop %v99
    %s101 = sld [smem:[#allocation8 + $0x3]]
    %v102 = vstv %s101
    %v103 = vmul.f32 %v100, %v102
    %v104 = vadd.f32 %v93, %v103
    %s105 = sld [smem:[#allocation3 + $0x4]]
    %v106 = vstv %s105
    %v107 = vmul.f32 %v58, %v106
    %s108 = sld [smem:[#allocation6 + $0x4]]
    %v109 = vstv %s108
    %v110 = vadd.f32 %v107, %v109
    %v111 = vtanh.pop %v110
    %s112 = sld [smem:[#allocation8 + $0x4]]
    %v113 = vstv %s112
    %v114 = vmul.f32 %v111, %v113
    %v115 = vadd.f32 %v104, %v114
    %s116 = sld [smem:[#allocation3 + $0x5]]
    %v117 = vstv %s116
    %v118 = vmul.f32 %v58, %v117
    %s119 = sld [smem:[#allocation6 + $0x5]]
    %v120 = vstv %s119
    %v121 = vadd.f32 %v118, %v120
    %v122 = vtanh.pop %v121
    %s123 = sld [smem:[#allocation8 + $0x5]]
    %v124 = vstv %s123
    %v125 = vmul.f32 %v122, %v124
    %v126 = vadd.f32 %v115, %v125
    %s127 = sld [smem:[#allocation3 + $0x6]]
    %v128 = vstv %s127
    %v129 = vmul.f32 %v58, %v128
    %s130 = sld [smem:[#allocation6 + $0x6]]
    %v131 = vstv %s130
    %v132 = vadd.f32 %v129, %v131
    %v133 = vtanh.pop %v132
    %s134 = sld [smem:[#allocation8 + $0x6]]
    %v135 = vstv %s134
    %v136 = vmul.f32 %v133, %v135
    %v137 = vadd.f32 %v126, %v136
    %s138 = sld [smem:[#allocation3 + $0x7]]
    %v139 = vstv %s138
    %v140 = vmul.f32 %v58, %v139
    %s141 = sld [smem:[#allocation6 + $0x7]]
    %v142 = vstv %s141
    %v143 = vadd.f32 %v140, %v142
    %v144 = vtanh.pop %v143
    %s145 = sld [smem:[#allocation8 + $0x7]]
    %v146 = vstv %s145
    %v147 = vmul.f32 %v144, %v146
    %v148 = vadd.f32 %v137, %v147
    %s149 = sld [smem:[#allocation3 + $0x8]]
    %v150 = vstv %s149
    %v151 = vmul.f32 %v58, %v150
    %s152 = sld [smem:[#allocation6 + $0x8]]
    %v153 = vstv %s152
    %v154 = vadd.f32 %v151, %v153
    %v155 = vtanh.pop %v154
    %s156 = sld [smem:[#allocation8 + $0x8]]
    %v157 = vstv %s156
    %v158 = vmul.f32 %v155, %v157
    %v159 = vadd.f32 %v148, %v158
    %s160 = sld [smem:[#allocation3 + $0x9]]
    %v161 = vstv %s160
    %v162 = vmul.f32 %v58, %v161
    %s163 = sld [smem:[#allocation6 + $0x9]]
    %v164 = vstv %s163
    %v165 = vadd.f32 %v162, %v164
    %v166 = vtanh.pop %v165
    %s167 = sld [smem:[#allocation8 + $0x9]]
    %v168 = vstv %s167
    %v169 = vmul.f32 %v166, %v168
    %v170 = vadd.f32 %v159, %v169
    %s171 = sld [smem:[#allocation3 + $0xa]]
    %v172 = vstv %s171
    %v173 = vmul.f32 %v58, %v172
    %s174 = sld [smem:[#allocation6 + $0xa]]
    %v175 = vstv %s174
    %v176 = vadd.f32 %v173, %v175
    %v177 = vtanh.pop %v176
    %s178 = sld [smem:[#allocation8 + $0xa]]
    %v179 = vstv %s178
    %v180 = vmul.f32 %v177, %v179
    %v181 = vadd.f32 %v170, %v180
    %s182 = sld [smem:[#allocation3 + $0xb]]
    %v183 = vstv %s182
    %v184 = vmul.f32 %v58, %v183
    %s185 = sld [smem:[#allocation6 + $0xb]]
    %v186 = vstv %s185
    %v187 = vadd.f32 %v184, %v186
    %v188 = vtanh.pop %v187
    %s189 = sld [smem:[#allocation8 + $0xb]]
    %v190 = vstv %s189
    %v191 = vmul.f32 %v188, %v190
    %v192 = vadd.f32 %v181, %v191
    %s193 = sld [smem:[#allocation3 + $0xc]]
    %v194 = vstv %s193
    %v195 = vmul.f32 %v58, %v194
    %s196 = sld [smem:[#allocation6 + $0xc]]
    %v197 = vstv %s196
    %v198 = vadd.f32 %v195, %v197
    %v199 = vtanh.pop %v198
    %s200 = sld [smem:[#allocation8 + $0xc]]
    %v201 = vstv %s200
    %v202 = vmul.f32 %v199, %v201
    %v203 = vadd.f32 %v192, %v202
    %s204 = sld [smem:[#allocation3 + $0xd]]
    %v205 = vstv %s204
    %v206 = vmul.f32 %v58, %v205
    %s207 = sld [smem:[#allocation6 + $0xd]]
    %v208 = vstv %s207
    %v209 = vadd.f32 %v206, %v208
    %v210 = vtanh.pop %v209
    %s211 = sld [smem:[#allocation8 + $0xd]]
    %v212 = vstv %s211
    %v213 = vmul.f32 %v210, %v212
    %v214 = vadd.f32 %v203, %v213
    %s215 = sld [smem:[#allocation3 + $0xe]]
    %v216 = vstv %s215
    %v217 = vmul.f32 %v58, %v216
    %s218 = sld [smem:[#allocation6 + $0xe]]
    %v219 = vstv %s218
    %v220 = vadd.f32 %v217, %v219
    %v221 = vtanh.pop %v220
    %s222 = sld [smem:[#allocation8 + $0xe]]
    %v223 = vstv %s222
    %v224 = vmul.f32 %v221, %v223
    %v225 = vadd.f32 %v214, %v224
    %s226 = sld [smem:[#allocation3 + $0xf]]
    %v227 = vstv %s226
    %v228 = vmul.f32 %v58, %v227
    %s229 = sld [smem:[#allocation6 + $0xf]]
    %v230 = vstv %s229
    %v231 = vadd.f32 %v228, %v230
    %v232 = vtanh.pop %v231
    %s233 = sld [smem:[#allocation8 + $0xf]]
    %v234 = vstv %s233
    %v235 = vmul.f32 %v232, %v234
    %v236 = vadd.f32 %v225, %v235
    %237 = vst [vmem:[#allocation9] sm:$0x1] %v236
    // Predicated region
    $region34: #{tpu_custom_call.1} parent=1 // pred_check
      _
    $region35: #{tpu_custom_call.1} parent=1 // pred_check_branch
      %239 = sbr.rel (0) target = $region37
    $region36: #{tpu_custom_call.1} parent=1 // pred_region
      %s241 = ssub.s32 16, 16
      %242 = vsyncadd [#allocation4], %s241
      %s244 = sshll.u32 [#allocation9], 4
      %s245 = int_to_ptr.vmem [resolvable:$true] %s244
      %247 = dma.vmem_to_hbm [thread:$0]  %s245, 16, %s5, [#allocation4]
    $region37: #{tpu_custom_call.1} parent=1 // pred_fallthru
      _
    // Predicated region
    $region38: #{tpu_custom_call.1} parent=1 // pred_check
      _
    $region39: #{tpu_custom_call.1} parent=1 // pred_check_branch
      %249 = sbr.rel (0) target = $region41
    $region40: #{tpu_custom_call.1} parent=1 // pred_region
      %250 = dma.done [#allocation4], 16
    $region41: #{tpu_custom_call.1} parent=1 // pred_fallthru
      _
    %251 = vsyncpa [#allocation4], 1
    %252 = vsyncpa [#allocation5], 1
    %253 = vsyncpa [#allocation7], 1

</llo_original>
